<compile_context>
chip_gen: v5e
topology: v5e:2x2
jax: 0.10.0
libtpu: 0.0.40
codegen_flags: <defaults>
</compile_context>

<pallas_src>
import functools

import numpy as np
import jax
import jax.numpy as jnp
from jax import lax
from jax.experimental import pallas as pl
from jax.experimental.pallas import tpu as pltpu


def _elu(x):
    # torch.nn.ELU(alpha=1.0).  exp(min(x,0)) - 1 keeps the exp on the EUP slot;
    # the cancellation near 0- is ~1e-7 absolute, far below test tolerance.
    return jnp.where(x > 0.0, x, jnp.exp(jnp.minimum(x, 0.0)) - 1.0)


def _cnn_kernel(x_ref,
                wstk_ref, bf_ref,
                pm_ref, pc_ref, pp_ref,
                w3_ref, b3_ref,
                w4_ref, b4_ref,
                wl_ref, bl_ref,
                out_ref, *, T):
    f32 = jnp.float32
    x = x_ref[0]                                             # (C_in, T_pad)
    C, T_pad = x.shape
    t_idx = lax.broadcasted_iota(jnp.int32, (C, T_pad), 1)

    # temporal +/-1 shifts ('same' conv zero padding) via XLU roll + lane mask.
    xm1 = jnp.where(t_idx == 0, 0.0, pltpu.roll(x, shift=1, axis=1))
    xp1 = jnp.where(t_idx >= T - 1, 0.0, pltpu.roll(x, shift=T_pad - 1, axis=1))

    # fused conv1 + BN1 + conv2 + BN2: one MXU matmul with K = 3*C_in.
    xs = jnp.concatenate([xm1, x, xp1], axis=0)              # (3*C_in, T_pad)
    z2 = jnp.dot(wstk_ref[...], xs, preferred_element_type=f32) + bf_ref[...]
    a2 = _elu(z2)                                            # (F1*D, T_pad)

    # AvgPool(1,tp1) fused with conv3's +/-1 shifts: three tiny (T_pad, Tp1)
    # matmuls; their zero rows also kill the lane-padding columns of a2.
    pm1 = jnp.dot(a2, pm_ref[...], preferred_element_type=f32)   # p1[s-1]
    p1c = jnp.dot(a2, pc_ref[...], preferred_element_type=f32)   # p1[s]
    pp1 = jnp.dot(a2, pp_ref[...], preferred_element_type=f32)   # p1[s+1]

    # conv3: depthwise temporal taps stay on the VPU (overlaps with MXU work).
    w3 = w3_ref[...]                                         # (F1*D, 3)
    z3 = w3[:, 0:1] * pm1 + w3[:, 1:2] * p1c + w3[:, 2:3] * pp1 + b3_ref[...]

    # conv4 (1x1) with BN3 folded in, then ELU.
    z4 = jnp.dot(w4_ref[...], z3, preferred_element_type=f32) + b4_ref[...]
    a4 = _elu(z4)                                            # (F2, Tp1)

    # AvgPool(1,tp2) + flatten + Linear fused into one weighted full reduction.
    y = jnp.sum(a4 * wl_ref[...], axis=0, keepdims=True)     # (1, Tp1)
    y = jnp.sum(y, axis=1, keepdims=True) + bl_ref[...]      # (1, 1)
    out_ref[...] = y.reshape(1, 1, 1)


def cnn_forward_pallas(x, params, cfg):
    B, C, T = x.shape
    F1, D, F2 = cfg["F1"], cfg["D"], cfg["F2"]
    tp1, tp2 = cfg["temporalPool1"], cfg["temporalPool2"]
    O = F1 * D
    Tp1 = T // tp1
    Tp2 = Tp1 // tp2
    T_pad = ((T + 127) // 128) * 128
    eps = 1e-5
    f32 = jnp.float32

    # ---- trace-time parameter fusion (tiny jnp work, baked under jit) ----
    def bn_fold(gamma, beta, mean, var):
        s = gamma / jnp.sqrt(var + eps)
        return s, beta - mean * s

    s1, t1 = bn_fold(*params["bn1"])                         # (F1,)
    s2, t2 = bn_fold(*params["bn2"])                         # (O,)
    s3, t3 = bn_fold(*params["bn3"])                         # (F2,)

    w1taps = params["w1"].reshape(F1, 3).astype(f32)
    w2g = params["w2"].reshape(F1, D, C).astype(f32)

    # conv1+BN1+conv2+BN2:  z2 = W_stk @ [x(t-1); x(t); x(t+1)] + b_fused
    base = s2.reshape(F1, D, 1) * s1.reshape(F1, 1, 1) * w2g              # (F1,D,C)
    W_stk = jnp.concatenate(
        [(base * w1taps[:, k].reshape(F1, 1, 1)).reshape(O, C) for k in range(3)],
        axis=1).astype(f32)                                               # (O, 3C)
    row_sum = jnp.sum(w2g, axis=2)                                        # (F1, D)
    b_fused = (s2.reshape(F1, D) * (s1 * params["b1"] + t1).reshape(F1, 1)
               * row_sum).reshape(O) + s2 * params["b2"] + t2
    b_fused = b_fused.reshape(O, 1).astype(f32)

    # AvgPool(1,tp1) and conv3's +/-1 shifts as tiny (T_pad, Tp1) matrices.
    ti = jnp.arange(T_pad)[:, None]
    si = jnp.arange(Tp1)[None, :]
    valid = ti < T
    grp = ti // tp1
    P_c = ((grp == si) & valid).astype(f32) / tp1
    P_m = ((grp == si - 1) & valid).astype(f32) / tp1        # -> p1[s-1] (zero at s=0)
    P_p = ((grp == si + 1) & valid).astype(f32) / tp1        # -> p1[s+1] (zero at end)

    w3t = params["w3"].reshape(O, 3).astype(f32)
    b3 = params["b3"].reshape(O, 1).astype(f32)

    # BN3 folded into conv4.
    W4f = (params["w4"].reshape(F2, O) * s3[:, None]).astype(f32)
    b4f = (s3 * params["b4"] + t3).reshape(F2, 1).astype(f32)

    # AvgPool(1,tp2) + flatten + Linear fused into one (F2, Tp1) weight.
    WL = (jnp.repeat(params["w_lin"].reshape(F2, Tp2), tp2, axis=1) / tp2).astype(f32)
    bl = params["b_lin"].reshape(1, 1).astype(f32)

    x_pad = jnp.pad(x.astype(f32), ((0, 0), (0, 0), (0, T_pad - T)))      # lane-dense

    weights = [W_stk, b_fused, P_m, P_c, P_p, w3t, b3, W4f, b4f, WL, bl]

    def const_spec(a):
        nd = a.ndim
        return pl.BlockSpec(a.shape, lambda b, _nd=nd: (0,) * _nd)

    out = pl.pallas_call(
        functools.partial(_cnn_kernel, T=T),
        out_shape=jax.ShapeDtypeStruct((B, 1, 1), f32),
        grid=(B,),
        in_specs=[pl.BlockSpec((1, C, T_pad), lambda b: (b, 0, 0))]
                 + [const_spec(w) for w in weights],
        out_specs=pl.BlockSpec((1, 1, 1), lambda b: (b, 0, 0)),
        compiler_params=pltpu.CompilerParams(
            dimension_semantics=("parallel",),
            vmem_limit_bytes=32 * 1024 * 1024),
    )(x_pad, *weights)
    return out.reshape(B)


def cnn_forward_reference(x, params, cfg):
    """Pure-JAX NCHW reference mirroring the PyTorch forward (eval mode)."""
    F1, F2 = cfg["F1"], cfg["F2"]
    O = F1 * cfg["D"]
    tp1, tp2 = cfg["temporalPool1"], cfg["temporalPool2"]
    eps = 1e-5
    dn = ("NCHW", "OIHW", "NCHW")
    hp = lax.Precision.HIGHEST

    def bn(h, gamma, beta, mean, var):
        return ((h - mean[None, :, None, None])
                / jnp.sqrt(var + eps)[None, :, None, None]
                * gamma[None, :, None, None] + beta[None, :, None, None])

    h = x[:, None, :, :]
    h = lax.conv_general_dilated(h, params["w1"], (1, 1), ((0, 0), (1, 1)),
                                 dimension_numbers=dn, precision=hp)
    h = h + params["b1"][None, :, None, None]
    h = bn(h, *params["bn1"])
    h = lax.conv_general_dilated(h, params["w2"], (1, 1), "VALID",
                                 dimension_numbers=dn, feature_group_count=F1,
                                 precision=hp)
    h = h + params["b2"][None, :, None, None]
    h = bn(h, *params["bn2"])
    h = jax.nn.elu(h)
    Bn, Ch, H, W = h.shape
    h = h.reshape(Bn, Ch, H, W // tp1, tp1).mean(-1)
    h = lax.conv_general_dilated(h, params["w3"], (1, 1), ((0, 0), (1, 1)),
                                 dimension_numbers=dn, feature_group_count=O,
                                 precision=hp)
    h = h + params["b3"][None, :, None, None]
    h = lax.conv_general_dilated(h, params["w4"], (1, 1), "VALID",
                                 dimension_numbers=dn, precision=hp)
    h = h + params["b4"][None, :, None, None]
    h = bn(h, *params["bn3"])
    h = jax.nn.elu(h)
    Bn, Ch, H, W = h.shape
    h = h.reshape(Bn, Ch, H, W // tp2, tp2).mean(-1)
    flat = h.reshape(Bn, -1)
    y = jnp.matmul(flat, params["w_lin"].T, precision=hp) + params["b_lin"]
    return y.reshape(-1)


if __name__ == "__main__":
    # small shapes consistent with the module: x is (batch, num_input_channels, input_length)
    cfg = dict(F1=4, D=4, F2=8, temporalPool1=2, temporalPool2=5,
               input_length=40, num_input_channels=8)
    B = 2
    C, T = cfg["num_input_channels"], cfg["input_length"]
    F1, D, F2 = cfg["F1"], cfg["D"], cfg["F2"]
    O = F1 * D
    Tp2 = T // (cfg["temporalPool1"] * cfg["temporalPool2"])

    keys = iter(jax.random.split(jax.random.PRNGKey(0), 24))

    def nrm(shape, scale=0.2):
        return scale * jax.random.normal(next(keys), shape, dtype=jnp.float32)

    params = {
        "w1": nrm((F1, 1, 1, 3)),
        "b1": nrm((F1,), 0.1),
        "w2": nrm((O, 1, C, 1)),
        "b2": nrm((O,), 0.1),
        "w3": nrm((O, 1, 1, 3)),
        "b3": nrm((O,), 0.1),
        "w4": nrm((F2, O, 1, 1)),
        "b4": nrm((F2,), 0.1),
        "w_lin": nrm((1, F2 * Tp2)),
        "b_lin": nrm((1,), 0.1),
        "bn1": (1.0 + nrm((F1,), 0.1), nrm((F1,), 0.1), nrm((F1,), 0.1),
                0.8 + 0.2 * jax.random.uniform(next(keys), (F1,))),
        "bn2": (1.0 + nrm((O,), 0.1), nrm((O,), 0.1), nrm((O,), 0.1),
                0.8 + 0.2 * jax.random.uniform(next(keys), (O,))),
        "bn3": (1.0 + nrm((F2,), 0.1), nrm((F2,), 0.1), nrm((F2,), 0.1),
                0.8 + 0.2 * jax.random.uniform(next(keys), (F2,))),
    }
    x = jax.random.normal(next(keys), (B, C, T), dtype=jnp.float32)

    # jit bakes the (tiny) fused-weight construction once; cfg is closed over.
    fwd = jax.jit(lambda xx, pp: cnn_forward_pallas(xx, pp, cfg))

    y_kernel = jax.block_until_ready(fwd(x, params))
    y_ref = jax.block_until_ready(cnn_forward_reference(x, params, cfg))

    assert y_kernel.shape == (B,)
    np.testing.assert_allclose(np.asarray(y_kernel), np.asarray(y_ref),
                               rtol=2e-2, atol=2e-3)
    print("KERNEL_OK")
</pallas_src>

<mosaic_0001>
module attributes {stable_mosaic.version = 11 : i64} {
  func.func @_cnn_kernel(%arg0: i32, %arg1: memref<1x8x128xf32, #tpu.memory_space<vmem>>, %arg2: memref<16x24xf32, #tpu.memory_space<vmem>>, %arg3: memref<16x1xf32, #tpu.memory_space<vmem>>, %arg4: memref<128x20xf32, #tpu.memory_space<vmem>>, %arg5: memref<128x20xf32, #tpu.memory_space<vmem>>, %arg6: memref<128x20xf32, #tpu.memory_space<vmem>>, %arg7: memref<16x3xf32, #tpu.memory_space<vmem>>, %arg8: memref<16x1xf32, #tpu.memory_space<vmem>>, %arg9: memref<8x16xf32, #tpu.memory_space<vmem>>, %arg10: memref<8x1xf32, #tpu.memory_space<vmem>>, %arg11: memref<8x20xf32, #tpu.memory_space<vmem>>, %arg12: memref<1x1xf32, #tpu.memory_space<vmem>>, %arg13: memref<1x1x1xf32, #tpu.memory_space<vmem>>) attributes {dimension_semantics = [#tpu.dimension_semantics<parallel>], iteration_bounds = array<i64: 2>, scalar_prefetch = 0 : i64, scratch_operands = 0 : i64, tpu.core_type = #tpu.core_type<tc>, window_params = [{transform_indices = @transform_0, window_bounds = array<i64: 1, 8, 128>}, {pipeline_mode = #tpu.pipeline_mode<synchronous>, transform_indices = @transform_1, window_bounds = array<i64: 16, 24>}, {pipeline_mode = #tpu.pipeline_mode<synchronous>, transform_indices = @transform_2, window_bounds = array<i64: 16, 1>}, {pipeline_mode = #tpu.pipeline_mode<synchronous>, transform_indices = @transform_3, window_bounds = array<i64: 128, 20>}, {pipeline_mode = #tpu.pipeline_mode<synchronous>, transform_indices = @transform_4, window_bounds = array<i64: 128, 20>}, {pipeline_mode = #tpu.pipeline_mode<synchronous>, transform_indices = @transform_5, window_bounds = array<i64: 128, 20>}, {pipeline_mode = #tpu.pipeline_mode<synchronous>, transform_indices = @transform_6, window_bounds = array<i64: 16, 3>}, {pipeline_mode = #tpu.pipeline_mode<synchronous>, transform_indices = @transform_7, window_bounds = array<i64: 16, 1>}, {pipeline_mode = #tpu.pipeline_mode<synchronous>, transform_indices = @transform_8, window_bounds = array<i64: 8, 16>}, {pipeline_mode = #tpu.pipeline_mode<synchronous>, transform_indices = @transform_9, window_bounds = array<i64: 8, 1>}, {pipeline_mode = #tpu.pipeline_mode<synchronous>, transform_indices = @transform_10, window_bounds = array<i64: 8, 20>}, {pipeline_mode = #tpu.pipeline_mode<synchronous>, transform_indices = @transform_11, window_bounds = array<i64: 1, 1>}, {transform_indices = @transform_12, window_bounds = array<i64: 1, 1, 1>}]} {
    %c0 = arith.constant 0 : index
    %c0_0 = arith.constant 0 : index
    %c0_1 = arith.constant 0 : index
    %0 = vector.load %arg1[%c0, %c0_0, %c0_1] : memref<1x8x128xf32, #tpu.memory_space<vmem>>, vector<1x8x128xf32>
    %1 = vector.shape_cast %0 : vector<1x8x128xf32> to vector<8x128xf32>
    %2 = tpu.iota {dimensions = array<i32: 1>} : vector<8x128xi32>
    %c0_i32 = arith.constant 0 : i32
    %3 = vector.broadcast %c0_i32 : i32 to vector<8x128xi32>
    %4 = arith.cmpi eq, %2, %3 : vector<8x128xi32>
    %c1_i32 = arith.constant 1 : i32
    %5 = tpu.dynamic_rotate %1 by %c1_i32 dim 1 : vector<8x128xf32>, i32 -> vector<8x128xf32>
    %cst = arith.constant 0.000000e+00 : f32
    %6 = vector.broadcast %cst : f32 to vector<8x128xf32>
    %7 = arith.select %4, %6, %5 : vector<8x128xi1>, vector<8x128xf32>
    %c39_i32 = arith.constant 39 : i32
    %8 = vector.broadcast %c39_i32 : i32 to vector<8x128xi32>
    %9 = arith.cmpi sge, %2, %8 : vector<8x128xi32>
    %c127_i32 = arith.constant 127 : i32
    %10 = tpu.dynamic_rotate %1 by %c127_i32 dim 1 : vector<8x128xf32>, i32 -> vector<8x128xf32>
    %cst_2 = arith.constant 0.000000e+00 : f32
    %11 = vector.broadcast %cst_2 : f32 to vector<8x128xf32>
    %12 = arith.select %9, %11, %10 : vector<8x128xi1>, vector<8x128xf32>
    %13 = tpu.concatenate %7, %1, %12 in 0 : vector<8x128xf32>, vector<8x128xf32>, vector<8x128xf32> -> vector<24x128xf32>
    %c0_3 = arith.constant 0 : index
    %c0_4 = arith.constant 0 : index
    %14 = vector.load %arg2[%c0_3, %c0_4] : memref<16x24xf32, #tpu.memory_space<vmem>>, vector<16x24xf32>
    %cst_5 = arith.constant dense<0.000000e+00> : vector<16x128xf32>
    %15 = tpu.matmul %14, %13, %cst_5 {dimension_numbers = #tpu.dot_dimension_numbers<[1], [0], [0], [1], [0, 0, 1, 1], [], []>} : vector<16x24xf32>, vector<24x128xf32>, vector<16x128xf32> -> vector<16x128xf32>
    %c0_6 = arith.constant 0 : index
    %c0_7 = arith.constant 0 : index
    %16 = vector.load %arg3[%c0_6, %c0_7] : memref<16x1xf32, #tpu.memory_space<vmem>>, vector<16x1xf32>
    %17 = vector.broadcast %16 : vector<16x1xf32> to vector<16x128xf32>
    %18 = arith.addf %15, %17 : vector<16x128xf32>
    %cst_8 = arith.constant 0.000000e+00 : f32
    %19 = vector.broadcast %cst_8 : f32 to vector<16x128xf32>
    %20 = arith.cmpf ogt, %18, %19 : vector<16x128xf32>
    %cst_9 = arith.constant 0.000000e+00 : f32
    %21 = vector.broadcast %cst_9 : f32 to vector<16x128xf32>
    %22 = arith.minimumf %18, %21 : vector<16x128xf32>
    %23 = math.exp %22 : vector<16x128xf32>
    %cst_10 = arith.constant 1.000000e+00 : f32
    %24 = vector.broadcast %cst_10 : f32 to vector<16x128xf32>
    %25 = arith.subf %23, %24 : vector<16x128xf32>
    %26 = arith.select %20, %18, %25 : vector<16x128xi1>, vector<16x128xf32>
    %c0_11 = arith.constant 0 : index
    %c0_12 = arith.constant 0 : index
    %27 = vector.load %arg4[%c0_11, %c0_12] : memref<128x20xf32, #tpu.memory_space<vmem>>, vector<128x20xf32>
    %cst_13 = arith.constant dense<0.000000e+00> : vector<16x20xf32>
    %28 = tpu.matmul %26, %27, %cst_13 {dimension_numbers = #tpu.dot_dimension_numbers<[1], [0], [0], [1], [0, 0, 1, 1], [], []>} : vector<16x128xf32>, vector<128x20xf32>, vector<16x20xf32> -> vector<16x20xf32>
    %c0_14 = arith.constant 0 : index
    %c0_15 = arith.constant 0 : index
    %29 = vector.load %arg5[%c0_14, %c0_15] : memref<128x20xf32, #tpu.memory_space<vmem>>, vector<128x20xf32>
    %cst_16 = arith.constant dense<0.000000e+00> : vector<16x20xf32>
    %30 = tpu.matmul %26, %29, %cst_16 {dimension_numbers = #tpu.dot_dimension_numbers<[1], [0], [0], [1], [0, 0, 1, 1], [], []>} : vector<16x128xf32>, vector<128x20xf32>, vector<16x20xf32> -> vector<16x20xf32>
    %c0_17 = arith.constant 0 : index
    %c0_18 = arith.constant 0 : index
    %31 = vector.load %arg6[%c0_17, %c0_18] : memref<128x20xf32, #tpu.memory_space<vmem>>, vector<128x20xf32>
    %cst_19 = arith.constant dense<0.000000e+00> : vector<16x20xf32>
    %32 = tpu.matmul %26, %31, %cst_19 {dimension_numbers = #tpu.dot_dimension_numbers<[1], [0], [0], [1], [0, 0, 1, 1], [], []>} : vector<16x128xf32>, vector<128x20xf32>, vector<16x20xf32> -> vector<16x20xf32>
    %c0_20 = arith.constant 0 : index
    %c0_21 = arith.constant 0 : index
    %33 = vector.load %arg7[%c0_20, %c0_21] : memref<16x3xf32, #tpu.memory_space<vmem>>, vector<16x3xf32>
    %34 = vector.extract_strided_slice %33 {offsets = [0, 0], sizes = [16, 1], strides = [1, 1]} : vector<16x3xf32> to vector<16x1xf32>
    %35 = vector.broadcast %34 : vector<16x1xf32> to vector<16x20xf32>
    %36 = arith.mulf %35, %28 : vector<16x20xf32>
    %37 = vector.extract_strided_slice %33 {offsets = [0, 1], sizes = [16, 1], strides = [1, 1]} : vector<16x3xf32> to vector<16x1xf32>
    %38 = vector.broadcast %37 : vector<16x1xf32> to vector<16x20xf32>
    %39 = arith.mulf %38, %30 : vector<16x20xf32>
    %40 = arith.addf %36, %39 : vector<16x20xf32>
    %41 = vector.extract_strided_slice %33 {offsets = [0, 2], sizes = [16, 1], strides = [1, 1]} : vector<16x3xf32> to vector<16x1xf32>
    %42 = vector.broadcast %41 : vector<16x1xf32> to vector<16x20xf32>
    %43 = arith.mulf %42, %32 : vector<16x20xf32>
    %44 = arith.addf %40, %43 : vector<16x20xf32>
    %c0_22 = arith.constant 0 : index
    %c0_23 = arith.constant 0 : index
    %45 = vector.load %arg8[%c0_22, %c0_23] : memref<16x1xf32, #tpu.memory_space<vmem>>, vector<16x1xf32>
    %46 = vector.broadcast %45 : vector<16x1xf32> to vector<16x20xf32>
    %47 = arith.addf %44, %46 : vector<16x20xf32>
    %c0_24 = arith.constant 0 : index
    %c0_25 = arith.constant 0 : index
    %48 = vector.load %arg9[%c0_24, %c0_25] : memref<8x16xf32, #tpu.memory_space<vmem>>, vector<8x16xf32>
    %cst_26 = arith.constant dense<0.000000e+00> : vector<8x20xf32>
    %49 = tpu.matmul %48, %47, %cst_26 {dimension_numbers = #tpu.dot_dimension_numbers<[1], [0], [0], [1], [0, 0, 1, 1], [], []>} : vector<8x16xf32>, vector<16x20xf32>, vector<8x20xf32> -> vector<8x20xf32>
    %c0_27 = arith.constant 0 : index
    %c0_28 = arith.constant 0 : index
    %50 = vector.load %arg10[%c0_27, %c0_28] : memref<8x1xf32, #tpu.memory_space<vmem>>, vector<8x1xf32>
    %51 = vector.broadcast %50 : vector<8x1xf32> to vector<8x20xf32>
    %52 = arith.addf %49, %51 : vector<8x20xf32>
    %cst_29 = arith.constant 0.000000e+00 : f32
    %53 = vector.broadcast %cst_29 : f32 to vector<8x20xf32>
    %54 = arith.cmpf ogt, %52, %53 : vector<8x20xf32>
    %cst_30 = arith.constant 0.000000e+00 : f32
    %55 = vector.broadcast %cst_30 : f32 to vector<8x20xf32>
    %56 = arith.minimumf %52, %55 : vector<8x20xf32>
    %57 = math.exp %56 : vector<8x20xf32>
    %cst_31 = arith.constant 1.000000e+00 : f32
    %58 = vector.broadcast %cst_31 : f32 to vector<8x20xf32>
    %59 = arith.subf %57, %58 : vector<8x20xf32>
    %60 = arith.select %54, %52, %59 : vector<8x20xi1>, vector<8x20xf32>
    %c0_32 = arith.constant 0 : index
    %c0_33 = arith.constant 0 : index
    %61 = vector.load %arg11[%c0_32, %c0_33] : memref<8x20xf32, #tpu.memory_space<vmem>>, vector<8x20xf32>
    %62 = arith.mulf %60, %61 : vector<8x20xf32>
    %cst_34 = arith.constant dense<0.000000e+00> : vector<20xf32>
    %63 = vector.multi_reduction <add>, %62, %cst_34 [0] : vector<8x20xf32> to vector<20xf32>
    %64 = vector.shape_cast %63 : vector<20xf32> to vector<1x20xf32>
    %cst_35 = arith.constant dense<0.000000e+00> : vector<1xf32>
    %65 = vector.multi_reduction <add>, %64, %cst_35 [1] : vector<1x20xf32> to vector<1xf32>
    %66 = vector.shape_cast %65 : vector<1xf32> to vector<1x1xf32>
    %c0_36 = arith.constant 0 : index
    %c0_37 = arith.constant 0 : index
    %67 = vector.load %arg12[%c0_36, %c0_37] : memref<1x1xf32, #tpu.memory_space<vmem>>, vector<1x1xf32>
    %68 = arith.addf %66, %67 : vector<1x1xf32>
    %69 = vector.shape_cast %68 : vector<1x1xf32> to vector<1x1x1xf32>
    %c0_38 = arith.constant 0 : index
    %c0_39 = arith.constant 0 : index
    %c0_40 = arith.constant 0 : index
    %70 = vector.load %arg13[%c0_38, %c0_39, %c0_40] : memref<1x1x1xf32, #tpu.memory_space<vmem>>, vector<1x1x1xf32>
    tpu.vector_store %arg13[%c0_38, %c0_39, %c0_40], %69 {strides = array<i32>} : memref<1x1x1xf32, #tpu.memory_space<vmem>>, vector<1x1x1xf32>,
    return
  }
  func.func @transform_0(%arg0: i32) -> (i32, i32, i32) {
    %c0_i32 = arith.constant 0 : i32
    %c0_i32_0 = arith.constant 0 : i32
    %c0_i32_1 = arith.constant 0 : i32
    return %arg0, %c0_i32, %c0_i32_0 : i32, i32, i32
  }
  func.func @transform_1(%arg0: i32) -> (i32, i32) {
    %c0_i32 = arith.constant 0 : i32
    %c0_i32_0 = arith.constant 0 : i32
    %c0_i32_1 = arith.constant 0 : i32
    return %c0_i32, %c0_i32_0 : i32, i32
  }
  func.func @transform_2(%arg0: i32) -> (i32, i32) {
    %c0_i32 = arith.constant 0 : i32
    %c0_i32_0 = arith.constant 0 : i32
    %c0_i32_1 = arith.constant 0 : i32
    return %c0_i32, %c0_i32_0 : i32, i32
  }
  func.func @transform_3(%arg0: i32) -> (i32, i32) {
    %c0_i32 = arith.constant 0 : i32
    %c0_i32_0 = arith.constant 0 : i32
    %c0_i32_1 = arith.constant 0 : i32
    return %c0_i32, %c0_i32_0 : i32, i32
  }
  func.func @transform_4(%arg0: i32) -> (i32, i32) {
    %c0_i32 = arith.constant 0 : i32
    %c0_i32_0 = arith.constant 0 : i32
    %c0_i32_1 = arith.constant 0 : i32
    return %c0_i32, %c0_i32_0 : i32, i32
  }
  func.func @transform_5(%arg0: i32) -> (i32, i32) {
    %c0_i32 = arith.constant 0 : i32
    %c0_i32_0 = arith.constant 0 : i32
    %c0_i32_1 = arith.constant 0 : i32
    return %c0_i32, %c0_i32_0 : i32, i32
  }
  func.func @transform_6(%arg0: i32) -> (i32, i32) {
    %c0_i32 = arith.constant 0 : i32
    %c0_i32_0 = arith.constant 0 : i32
    %c0_i32_1 = arith.constant 0 : i32
    return %c0_i32, %c0_i32_0 : i32, i32
  }
  func.func @transform_7(%arg0: i32) -> (i32, i32) {
    %c0_i32 = arith.constant 0 : i32
    %c0_i32_0 = arith.constant 0 : i32
    %c0_i32_1 = arith.constant 0 : i32
    return %c0_i32, %c0_i32_0 : i32, i32
  }
  func.func @transform_8(%arg0: i32) -> (i32, i32) {
    %c0_i32 = arith.constant 0 : i32
    %c0_i32_0 = arith.constant 0 : i32
    %c0_i32_1 = arith.constant 0 : i32
    return %c0_i32, %c0_i32_0 : i32, i32
  }
  func.func @transform_9(%arg0: i32) -> (i32, i32) {
    %c0_i32 = arith.constant 0 : i32
    %c0_i32_0 = arith.constant 0 : i32
    %c0_i32_1 = arith.constant 0 : i32
    return %c0_i32, %c0_i32_0 : i32, i32
  }
  func.func @transform_10(%arg0: i32) -> (i32, i32) {
    %c0_i32 = arith.constant 0 : i32
    %c0_i32_0 = arith.constant 0 : i32
    %c0_i32_1 = arith.constant 0 : i32
    return %c0_i32, %c0_i32_0 : i32, i32
  }
  func.func @transform_11(%arg0: i32) -> (i32, i32) {
    %c0_i32 = arith.constant 0 : i32
    %c0_i32_0 = arith.constant 0 : i32
    %c0_i32_1 = arith.constant 0 : i32
    return %c0_i32, %c0_i32_0 : i32, i32
  }
  func.func @transform_12(%arg0: i32) -> (i32, i32, i32) {
    %c0_i32 = arith.constant 0 : i32
    %c0_i32_0 = arith.constant 0 : i32
    %c0_i32_1 = arith.constant 0 : i32
    return %arg0, %c0_i32, %c0_i32_0 : i32, i32, i32
  }
}

</mosaic_0001>

<llo_original>
// kernel: _lambda_.1
$region0: #{_lambda_.1}
  #allocation0 [shape = 'u32[]', space=smem, size = 0x4, offset = 0x4, fixed_abs, tag = 'smem constant byte address 0x4 - core index']
  #allocation1 [shape = 'u32[72,128]{1,0:T(1,128)}', space=vmem, size = 0x9000, scoped, tag = 'internal scratch']
  #allocation2 [shape = 'f32[1,1]{1,0:T(1,128)S(1)}', space=vmem, size = 0x200, scoped, tag = 'scoped memory for _lambda_.1']
  %s0 = inlined_call_operand.vmem [shape: f32[2,8,128], index: 0, kind: input, shape index: {}]
  %s1 = inlined_call_operand.vmem [shape: f32[16,24], index: 1, kind: input, shape index: {}]
  %s2 = inlined_call_operand.vmem [shape: f32[16,1], index: 2, kind: input, shape index: {}]
  %s3 = inlined_call_operand.vmem [shape: f32[128,20], index: 3, kind: input, shape index: {}]
  %s4 = inlined_call_operand.vmem [shape: f32[128,20], index: 4, kind: input, shape index: {}]
  %s5 = inlined_call_operand.vmem [shape: f32[128,20], index: 5, kind: input, shape index: {}]
  %s6 = inlined_call_operand.vmem [shape: f32[16,3], index: 6, kind: input, shape index: {}]
  %s7 = inlined_call_operand.vmem [shape: f32[16,1], index: 7, kind: input, shape index: {}]
  %s8 = inlined_call_operand.vmem [shape: f32[8,16], index: 8, kind: input, shape index: {}]
  %s9 = inlined_call_operand.vmem [shape: f32[8,1], index: 9, kind: input, shape index: {}]
  %s10 = inlined_call_operand.vmem [shape: f32[8,20], index: 10, kind: input, shape index: {}]
  %s11 = inlined_call_operand.<no memory space> [shape: f32[1,1], index: 11, kind: input, shape index: {}]
  %s12 = inlined_call_operand.vmem [shape: f32[2,1,1], index: 12, kind: output, shape index: {}]
  %s13 = sld [smem:[#allocation0]]
  $region81: #{_lambda_.1} parent=0
    _
  %s15 = ssub.s32 1, %s13
  %s16 = scalar_select 0, %s15, %s13
  %v17 = vstv %s11
  %18 = vst [vmem:[#allocation2] sm:$0x1] %v17
  loop: start=0, step=1, limit=4
  $region2: #{_lambda_.1} parent=0 // loop_pre_header
    _
  $region3: #{_lambda_.1} parent=0 // loop_header
    %s20 = sphi 0, %s24
    %p21 = scmp.ge.s32.totalorder %s20, 4
    %s30 = sphi 0, %s32
    %s33 = sphi 0, %s30
    %s34 = sphi 0, %s33
    %s50 = sphi 0, %s34
    %s54 = sphi 0, %s54
    %s56 = sphi 0, %s54
    %s57 = sphi 0, %s56
    %s71 = sphi 0, %s57
    %s75 = sphi 0, %s75
    %s77 = sphi 0, %s75
    %s78 = sphi 0, %s77
    %s92 = sphi 0, %s78
    %s96 = sphi 0, %s96
    %s98 = sphi 0, %s96
    %s99 = sphi 0, %s98
    %s113 = sphi 0, %s99
    %s117 = sphi 0, %s117
    %s119 = sphi 0, %s117
    %s120 = sphi 0, %s119
    %s134 = sphi 0, %s120
    %s138 = sphi 0, %s138
    %s140 = sphi 0, %s138
    %s141 = sphi 0, %s140
    %s155 = sphi 0, %s141
    %s159 = sphi 0, %s159
    %s161 = sphi 0, %s159
    %s162 = sphi 0, %s161
    %s176 = sphi 0, %s162
    %s180 = sphi 0, %s180
    %s182 = sphi 0, %s180
    %s183 = sphi 0, %s182
    %s197 = sphi 0, %s183
    %s201 = sphi 0, %s201
    %s203 = sphi 0, %s201
    %s204 = sphi 0, %s203
    %s218 = sphi 0, %s204
    %s222 = sphi 0, %s222
    %s224 = sphi 0, %s222
    %s225 = sphi 0, %s224
    %s239 = sphi 0, %s225
    %s243 = sphi 0, %s243
    %s245 = sphi 0, %s243
    %s246 = sphi 0, %s245
    %s260 = sphi 0, %s246
    %s264 = sphi 0, %s264
    %s266 = sphi 0, %s264
    %s267 = sphi 0, %s266
    %s281 = sphi 0, %s267
    %s287 = sphi 0, %s289
    %s290 = sphi 0, %s287
    %s291 = sphi 0, %s290
    %s307 = sphi 0, %s291
  $region4: #{_lambda_.1} parent=0 // loop_header_branch
    %23 = sbr.rel (%p21) target = $region8
  $region5: #{_lambda_.1} parent=0 // loop_body
    %s25 = ssub.s32 %s20, 1
    %s26 = ssub.s32 %s20, 2
    %s27 = sadd.s32 %s20, 1
    %s28 = ssub.s32 %s20, %s27
    %p29 = scmp.eq.s32.totalorder %s28, 0
    %s31 = sadd.s32 %s30, 1
    %s32 = scalar_select %p29, %s30, %s31
    %p35 = pneg %p29
    %p36 = scmp.eq.s32.totalorder %s20, 1
    %p37 = por %p35, %p36
    %p38 = scmp.ne.s32.totalorder %s30, %s33
    %p39 = scmp.eq.s32.totalorder %s20, 0
    %p40 = por %p38, %p39
    %p41 = scmp.ne.s32.totalorder %s30, %s33
    %p42 = scmp.eq.s32.totalorder %s25, 1
    %p43 = por %p41, %p42
    %p44 = scmp.ne.s32.totalorder %s33, %s34
    %p45 = scmp.eq.s32.totalorder %s25, 0
    %p46 = por %p44, %p45
    %p47 = scmp.ne.s32.totalorder %s33, %s34
    %p48 = scmp.eq.s32.totalorder %s26, 1
    %p49 = por %p47, %p48
    %p51 = scmp.ne.s32.totalorder %s34, %s50
    %p52 = scmp.eq.s32.totalorder %s26, 0
    %p53 = por %p51, %p52
    %s55 = sadd.s32 %s54, 1
    %p58 = scmp.eq.s32.totalorder %s20, 1
    %p59 = scmp.ne.s32.totalorder %s54, %s56
    %p60 = scmp.eq.s32.totalorder %s20, 0
    %p61 = por %p59, %p60
    %p62 = scmp.ne.s32.totalorder %s54, %s56
    %p63 = scmp.eq.s32.totalorder %s25, 1
    %p64 = por %p62, %p63
    %p65 = scmp.ne.s32.totalorder %s56, %s57
    %p66 = scmp.eq.s32.totalorder %s25, 0
    %p67 = por %p65, %p66
    %p68 = scmp.ne.s32.totalorder %s56, %s57
    %p69 = scmp.eq.s32.totalorder %s26, 1
    %p70 = por %p68, %p69
    %p72 = scmp.ne.s32.totalorder %s57, %s71
    %p73 = scmp.eq.s32.totalorder %s26, 0
    %p74 = por %p72, %p73
    %s76 = sadd.s32 %s75, 1
    %p79 = scmp.eq.s32.totalorder %s20, 1
    %p80 = scmp.ne.s32.totalorder %s75, %s77
    %p81 = scmp.eq.s32.totalorder %s20, 0
    %p82 = por %p80, %p81
    %p83 = scmp.ne.s32.totalorder %s75, %s77
    %p84 = scmp.eq.s32.totalorder %s25, 1
    %p85 = por %p83, %p84
    %p86 = scmp.ne.s32.totalorder %s77, %s78
    %p87 = scmp.eq.s32.totalorder %s25, 0
    %p88 = por %p86, %p87
    %p89 = scmp.ne.s32.totalorder %s77, %s78
    %p90 = scmp.eq.s32.totalorder %s26, 1
    %p91 = por %p89, %p90
    %p93 = scmp.ne.s32.totalorder %s78, %s92
    %p94 = scmp.eq.s32.totalorder %s26, 0
    %p95 = por %p93, %p94
    %s97 = sadd.s32 %s96, 1
    %p100 = scmp.eq.s32.totalorder %s20, 1
    %p101 = scmp.ne.s32.totalorder %s96, %s98
    %p102 = scmp.eq.s32.totalorder %s20, 0
    %p103 = por %p101, %p102
    %p104 = scmp.ne.s32.totalorder %s96, %s98
    %p105 = scmp.eq.s32.totalorder %s25, 1
    %p106 = por %p104, %p105
    %p107 = scmp.ne.s32.totalorder %s98, %s99
    %p108 = scmp.eq.s32.totalorder %s25, 0
    %p109 = por %p107, %p108
    %p110 = scmp.ne.s32.totalorder %s98, %s99
    %p111 = scmp.eq.s32.totalorder %s26, 1
    %p112 = por %p110, %p111
    %p114 = scmp.ne.s32.totalorder %s99, %s113
    %p115 = scmp.eq.s32.totalorder %s26, 0
    %p116 = por %p114, %p115
    %s118 = sadd.s32 %s117, 1
    %p121 = scmp.eq.s32.totalorder %s20, 1
    %p122 = scmp.ne.s32.totalorder %s117, %s119
    %p123 = scmp.eq.s32.totalorder %s20, 0
    %p124 = por %p122, %p123
    %p125 = scmp.ne.s32.totalorder %s117, %s119
    %p126 = scmp.eq.s32.totalorder %s25, 1
    %p127 = por %p125, %p126
    %p128 = scmp.ne.s32.totalorder %s119, %s120
    %p129 = scmp.eq.s32.totalorder %s25, 0
    %p130 = por %p128, %p129
    %p131 = scmp.ne.s32.totalorder %s119, %s120
    %p132 = scmp.eq.s32.totalorder %s26, 1
    %p133 = por %p131, %p132
    %p135 = scmp.ne.s32.totalorder %s120, %s134
    %p136 = scmp.eq.s32.totalorder %s26, 0
    %p137 = por %p135, %p136
    %s139 = sadd.s32 %s138, 1
    %p142 = scmp.eq.s32.totalorder %s20, 1
    %p143 = scmp.ne.s32.totalorder %s138, %s140
    %p144 = scmp.eq.s32.totalorder %s20, 0
    %p145 = por %p143, %p144
    %p146 = scmp.ne.s32.totalorder %s138, %s140
    %p147 = scmp.eq.s32.totalorder %s25, 1
    %p148 = por %p146, %p147
    %p149 = scmp.ne.s32.totalorder %s140, %s141
    %p150 = scmp.eq.s32.totalorder %s25, 0
    %p151 = por %p149, %p150
    %p152 = scmp.ne.s32.totalorder %s140, %s141
    %p153 = scmp.eq.s32.totalorder %s26, 1
    %p154 = por %p152, %p153
    %p156 = scmp.ne.s32.totalorder %s141, %s155
    %p157 = scmp.eq.s32.totalorder %s26, 0
    %p158 = por %p156, %p157
    %s160 = sadd.s32 %s159, 1
    %p163 = scmp.eq.s32.totalorder %s20, 1
    %p164 = scmp.ne.s32.totalorder %s159, %s161
    %p165 = scmp.eq.s32.totalorder %s20, 0
    %p166 = por %p164, %p165
    %p167 = scmp.ne.s32.totalorder %s159, %s161
    %p168 = scmp.eq.s32.totalorder %s25, 1
    %p169 = por %p167, %p168
    %p170 = scmp.ne.s32.totalorder %s161, %s162
    %p171 = scmp.eq.s32.totalorder %s25, 0
    %p172 = por %p170, %p171
    %p173 = scmp.ne.s32.totalorder %s161, %s162
    %p174 = scmp.eq.s32.totalorder %s26, 1
    %p175 = por %p173, %p174
    %p177 = scmp.ne.s32.totalorder %s162, %s176
    %p178 = scmp.eq.s32.totalorder %s26, 0
    %p179 = por %p177, %p178
    %s181 = sadd.s32 %s180, 1
    %p184 = scmp.eq.s32.totalorder %s20, 1
    %p185 = scmp.ne.s32.totalorder %s180, %s182
    %p186 = scmp.eq.s32.totalorder %s20, 0
    %p187 = por %p185, %p186
    %p188 = scmp.ne.s32.totalorder %s180, %s182
    %p189 = scmp.eq.s32.totalorder %s25, 1
    %p190 = por %p188, %p189
    %p191 = scmp.ne.s32.totalorder %s182, %s183
    %p192 = scmp.eq.s32.totalorder %s25, 0
    %p193 = por %p191, %p192
    %p194 = scmp.ne.s32.totalorder %s182, %s183
    %p195 = scmp.eq.s32.totalorder %s26, 1
    %p196 = por %p194, %p195
    %p198 = scmp.ne.s32.totalorder %s183, %s197
    %p199 = scmp.eq.s32.totalorder %s26, 0
    %p200 = por %p198, %p199
    %s202 = sadd.s32 %s201, 1
    %p205 = scmp.eq.s32.totalorder %s20, 1
    %p206 = scmp.ne.s32.totalorder %s201, %s203
    %p207 = scmp.eq.s32.totalorder %s20, 0
    %p208 = por %p206, %p207
    %p209 = scmp.ne.s32.totalorder %s201, %s203
    %p210 = scmp.eq.s32.totalorder %s25, 1
    %p211 = por %p209, %p210
    %p212 = scmp.ne.s32.totalorder %s203, %s204
    %p213 = scmp.eq.s32.totalorder %s25, 0
    %p214 = por %p212, %p213
    %p215 = scmp.ne.s32.totalorder %s203, %s204
    %p216 = scmp.eq.s32.totalorder %s26, 1
    %p217 = por %p215, %p216
    %p219 = scmp.ne.s32.totalorder %s204, %s218
    %p220 = scmp.eq.s32.totalorder %s26, 0
    %p221 = por %p219, %p220
    %s223 = sadd.s32 %s222, 1
    %p226 = scmp.eq.s32.totalorder %s20, 1
    %p227 = scmp.ne.s32.totalorder %s222, %s224
    %p228 = scmp.eq.s32.totalorder %s20, 0
    %p229 = por %p227, %p228
    %p230 = scmp.ne.s32.totalorder %s222, %s224
    %p231 = scmp.eq.s32.totalorder %s25, 1
    %p232 = por %p230, %p231
    %p233 = scmp.ne.s32.totalorder %s224, %s225
    %p234 = scmp.eq.s32.totalorder %s25, 0
    %p235 = por %p233, %p234
    %p236 = scmp.ne.s32.totalorder %s224, %s225
    %p237 = scmp.eq.s32.totalorder %s26, 1
    %p238 = por %p236, %p237
    %p240 = scmp.ne.s32.totalorder %s225, %s239
    %p241 = scmp.eq.s32.totalorder %s26, 0
    %p242 = por %p240, %p241
    %s244 = sadd.s32 %s243, 1
    %p247 = scmp.eq.s32.totalorder %s20, 1
    %p248 = scmp.ne.s32.totalorder %s243, %s245
    %p249 = scmp.eq.s32.totalorder %s20, 0
    %p250 = por %p248, %p249
    %p251 = scmp.ne.s32.totalorder %s243, %s245
    %p252 = scmp.eq.s32.totalorder %s25, 1
    %p253 = por %p251, %p252
    %p254 = scmp.ne.s32.totalorder %s245, %s246
    %p255 = scmp.eq.s32.totalorder %s25, 0
    %p256 = por %p254, %p255
    %p257 = scmp.ne.s32.totalorder %s245, %s246
    %p258 = scmp.eq.s32.totalorder %s26, 1
    %p259 = por %p257, %p258
    %p261 = scmp.ne.s32.totalorder %s246, %s260
    %p262 = scmp.eq.s32.totalorder %s26, 0
    %p263 = por %p261, %p262
    %s265 = sadd.s32 %s264, 1
    %p268 = scmp.eq.s32.totalorder %s20, 1
    %p269 = scmp.ne.s32.totalorder %s264, %s266
    %p270 = scmp.eq.s32.totalorder %s20, 0
    %p271 = por %p269, %p270
    %p272 = scmp.ne.s32.totalorder %s264, %s266
    %p273 = scmp.eq.s32.totalorder %s25, 1
    %p274 = por %p272, %p273
    %p275 = scmp.ne.s32.totalorder %s266, %s267
    %p276 = scmp.eq.s32.totalorder %s25, 0
    %p277 = por %p275, %p276
    %p278 = scmp.ne.s32.totalorder %s266, %s267
    %p279 = scmp.eq.s32.totalorder %s26, 1
    %p280 = por %p278, %p279
    %p282 = scmp.ne.s32.totalorder %s267, %s281
    %p283 = scmp.eq.s32.totalorder %s26, 0
    %p284 = por %p282, %p283
    %s285 = ssub.s32 %s20, %s27
    %p286 = scmp.eq.s32.totalorder %s285, 0
    %s288 = sadd.s32 %s287, 1
    %s289 = scalar_select %p286, %s287, %s288
    %p292 = pneg %p286
    %p293 = scmp.eq.s32.totalorder %s20, 1
    %p294 = por %p292, %p293
    %p295 = scmp.ne.s32.totalorder %s287, %s290
    %p296 = scmp.eq.s32.totalorder %s20, 0
    %p297 = por %p295, %p296
    %p298 = scmp.ne.s32.totalorder %s287, %s290
    %p299 = scmp.eq.s32.totalorder %s25, 1
    %p300 = por %p298, %p299
    %p301 = scmp.ne.s32.totalorder %s290, %s291
    %p302 = scmp.eq.s32.totalorder %s25, 0
    %p303 = por %p301, %p302
    %p304 = scmp.ne.s32.totalorder %s290, %s291
    %p305 = scmp.eq.s32.totalorder %s26, 1
    %p306 = por %p304, %p305
    %p308 = scmp.ne.s32.totalorder %s291, %s307
    %p309 = scmp.eq.s32.totalorder %s26, 0
    %p310 = por %p308, %p309
    %p311 = scmp.le.s32.totalorder 1, %s20
    %p312 = scmp.lt.s32.totalorder %s20, 3
    %p313 = pnand %p311, %p312
    %p314 = pneg %p313
    // Predicated region
    $region9: #{_lambda_.1} parent=5 // pred_check
      _
    $region10: #{_lambda_.1} parent=5 // pred_check_branch
      %316 = sbr.rel (%p313) target = $region12
    $region11: #{_lambda_.1} parent=5 // pred_region
      %s317 = ssub.s32 %s20, 1
      // Predicated region
      $region13: #{_lambda_.1} parent=11 // pred_check
        %p318 = pneg %p67
      $region14: #{_lambda_.1} parent=11 // pred_check_branch
        %320 = sbr.rel (%p318) target = $region16
      $region15: #{_lambda_.1} parent=11 // pred_region
        _
      $region16: #{_lambda_.1} parent=11 // pred_fallthru
        _
      // Predicated region
      $region17: #{_lambda_.1} parent=11 // pred_check
        %p321 = pneg %p88
      $region18: #{_lambda_.1} parent=11 // pred_check_branch
        %323 = sbr.rel (%p321) target = $region20
      $region19: #{_lambda_.1} parent=11 // pred_region
        _
      $region20: #{_lambda_.1} parent=11 // pred_fallthru
        _
      // Predicated region
      $region21: #{_lambda_.1} parent=11 // pred_check
        %p324 = pneg %p109
      $region22: #{_lambda_.1} parent=11 // pred_check_branch
        %326 = sbr.rel (%p324) target = $region24
      $region23: #{_lambda_.1} parent=11 // pred_region
        _
      $region24: #{_lambda_.1} parent=11 // pred_fallthru
        _
      // Predicated region
      $region25: #{_lambda_.1} parent=11 // pred_check
        %p327 = pneg %p130
      $region26: #{_lambda_.1} parent=11 // pred_check_branch
        %329 = sbr.rel (%p327) target = $region28
      $region27: #{_lambda_.1} parent=11 // pred_region
        _
      $region28: #{_lambda_.1} parent=11 // pred_fallthru
        _
      // Predicated region
      $region29: #{_lambda_.1} parent=11 // pred_check
        %p330 = pneg %p151
      $region30: #{_lambda_.1} parent=11 // pred_check_branch
        %332 = sbr.rel (%p330) target = $region32
      $region31: #{_lambda_.1} parent=11 // pred_region
        _
      $region32: #{_lambda_.1} parent=11 // pred_fallthru
        _
      // Predicated region
      $region33: #{_lambda_.1} parent=11 // pred_check
        %p333 = pneg %p172
      $region34: #{_lambda_.1} parent=11 // pred_check_branch
        %335 = sbr.rel (%p333) target = $region36
      $region35: #{_lambda_.1} parent=11 // pred_region
        _
      $region36: #{_lambda_.1} parent=11 // pred_fallthru
        _
      // Predicated region
      $region37: #{_lambda_.1} parent=11 // pred_check
        %p336 = pneg %p193
      $region38: #{_lambda_.1} parent=11 // pred_check_branch
        %338 = sbr.rel (%p336) target = $region40
      $region39: #{_lambda_.1} parent=11 // pred_region
        _
      $region40: #{_lambda_.1} parent=11 // pred_fallthru
        _
      // Predicated region
      $region41: #{_lambda_.1} parent=11 // pred_check
        %p339 = pneg %p214
      $region42: #{_lambda_.1} parent=11 // pred_check_branch
        %341 = sbr.rel (%p339) target = $region44
      $region43: #{_lambda_.1} parent=11 // pred_region
        _
      $region44: #{_lambda_.1} parent=11 // pred_fallthru
        _
      // Predicated region
      $region45: #{_lambda_.1} parent=11 // pred_check
        %p342 = pneg %p235
      $region46: #{_lambda_.1} parent=11 // pred_check_branch
        %344 = sbr.rel (%p342) target = $region48
      $region47: #{_lambda_.1} parent=11 // pred_region
        _
      $region48: #{_lambda_.1} parent=11 // pred_fallthru
        _
      // Predicated region
      $region49: #{_lambda_.1} parent=11 // pred_check
        %p345 = pneg %p256
      $region50: #{_lambda_.1} parent=11 // pred_check_branch
        %347 = sbr.rel (%p345) target = $region52
      $region51: #{_lambda_.1} parent=11 // pred_region
        _
      $region52: #{_lambda_.1} parent=11 // pred_fallthru
        _
      // Predicated region
      $region53: #{_lambda_.1} parent=11 // pred_check
        %p348 = pneg %p277
      $region54: #{_lambda_.1} parent=11 // pred_check_branch
        %350 = sbr.rel (%p348) target = $region56
      $region55: #{_lambda_.1} parent=11 // pred_region
        _
      $region56: #{_lambda_.1} parent=11 // pred_fallthru
        _
    $region12: #{_lambda_.1} parent=5 // pred_fallthru
      _
    %p351 = scmp.lt.s32.totalorder %s20, 2
    // Predicated region
    $region57: #{_lambda_.1} parent=5 // pred_check
      %p352 = pneg %p351
    $region58: #{_lambda_.1} parent=5 // pred_check_branch
      %354 = sbr.rel (%p352) target = $region60
    $region59: #{_lambda_.1} parent=5 // pred_region
      // Predicated region
      $region61: #{_lambda_.1} parent=59 // pred_check
        %p355 = pneg %p40
      $region62: #{_lambda_.1} parent=59 // pred_check_branch
        %357 = sbr.rel (%p355) target = $region64
      $region63: #{_lambda_.1} parent=59 // pred_region
        %p358 = scmp.lt.s32.totalorder %s20, 1
        %s359 = scalar_select %p358, %s20, 1
        %s360 = smul.addr %s359, 8
        %s361 = scalar_lea.vmem %s0, %s360
      $region64: #{_lambda_.1} parent=59 // pred_fallthru
        _
    $region60: #{_lambda_.1} parent=5 // pred_fallthru
      _
    %p362 = scmp.le.s32.totalorder 1, %s20
    %p363 = scmp.lt.s32.totalorder %s20, 3
    %p364 = pnand %p362, %p363
    %p365 = pneg %p364
    // Predicated region
    $region65: #{_lambda_.1} parent=5 // pred_check
      _
    $region66: #{_lambda_.1} parent=5 // pred_check_branch
      %367 = sbr.rel (%p364) target = $region68
    $region67: #{_lambda_.1} parent=5 // pred_region
      %s368 = ssub.s32 %s20, 1
      %p369 = scmp.lt.s32.totalorder %s25, 1
      %s370 = scalar_select %p369, %s25, 1
      %s371 = smul.addr %s370, 8
      %s372 = scalar_lea.vmem %s0, %s371
      %p373 = pneg %p46
      %p374 = pneg %p43
      %p375 = pneg %p67
      %p376 = pneg %p64
      %p377 = pneg %p88
      %p378 = pneg %p85
      %p379 = pneg %p109
      %p380 = pneg %p106
      %p381 = pneg %p130
      %p382 = pneg %p127
      %p383 = pneg %p151
      %p384 = pneg %p148
      %p385 = pneg %p172
      %p386 = pneg %p169
      %p387 = pneg %p193
      %p388 = pneg %p190
      %p389 = pneg %p214
      %p390 = pneg %p211
      %p391 = pneg %p235
      %p392 = pneg %p232
      %p393 = pneg %p256
      %p394 = pneg %p253
      %p395 = pneg %p277
      %p396 = pneg %p274
      %p397 = pneg %p303
      %p398 = pneg %p300
      %p399 = scmp.lt.s32.totalorder %s25, 1
      %s400 = scalar_select %p399, %s25, 1
      %s401 = scalar_lea.vmem %s12, %s400
      %p402 = scmp.lt.s32.totalorder %s25, 1
      %s403 = scalar_select %p402, %s25, 1
      %s404 = smul.addr %s403, 8
      %s405 = scalar_lea.vmem %s0, %s404
      %p406 = scmp.lt.s32.totalorder %s25, 1
      %s407 = scalar_select %p406, %s25, 1
      %s408 = scalar_lea.vmem %s12, %s407
      %v409 = vld [vmem:[%s405] sm:$0xff]
      %v410 = vlaneseq
      %v411 = vand.u32 %v410, 127
      %vm412 = vcmp.eq.s32.totalorder %v411, 0
      %413 = vrot.lane.b32.xlu0 %v409, 1
      %v414 = vpop.permute.xlu0 %413
      %v415 = vsel %vm412, 0.0, %v414
      %vm416 = vcmp.ge.s32.totalorder %v411, 39
      %417 = vrot.lane.b32.xlu0 %v409, 127
      %v418 = vpop.permute.xlu0 %417
      %v419 = vsel %vm416, 0.0, %v418
      %v420 = vld [vmem:[%s1] sm:$0xff]
      %v421 = vld [vmem:[%s1 + $0x8] sm:$0xff]
      %v422 = vld [vmem:[%s2] sm:$0xff]
      %v423 = vld [vmem:[%s2 + $0x8] sm:$0xff]
      %425 = vset.pattern.permute.xlu0 0
      %426 = vperm.xlu0 %425, %v422
      %v427 = vpop.permute.xlu0 %426
      %430 = vset.pattern.permute.xlu0 0
      %431 = vperm.xlu0 %430, %v423
      %v432 = vpop.permute.xlu0 %431
      %vm434 = vcmask 195584
      %v436 = vsel %vm434, %v420, 0
      %v439 = vsel %vm434, %v421, 0
      %441 = vmatpush.msra.mxu0 0.0
      %442 = vmatpush.msra.mxu0 0.0
      %443 = vmatpush.msra.mxu0 0.0
      %444 = vmatpush.msra.mxu0 0.0
      %445 = vmatpush.msra.mxu0 0.0
      %446 = vmatpush.msra.mxu0 0.0
      %447 = vmatpush.msra.mxu0 0.0
      %448 = vmatpush.msra.mxu0 0.0
      %449 = vmatpush.msra.mxu0 0.0
      %450 = vmatpush.msra.mxu0 0.0
      %451 = vmatpush.msra.mxu0 0.0
      %452 = vmatpush.msra.mxu0 0.0
      %453 = vmatpush.msra.mxu0 0.0
      %454 = vmatpush.msra.mxu0 %v419
      %455 = vmatpush.msra.mxu0 %v409
      %456 = vmatpush.msra.mxu0 %v415
      %457 = vmatmul.f32.gmra.mxu0 %v436
      %v458 = vpop.f32.mrf.mxu0
      %v459 = vadd.f32 %v427, %v458
      %460 = vmatmul.f32.gmra.mxu0 %v439
      %v461 = vpop.f32.mrf.mxu0
      %v462 = vadd.f32 %v432, %v461
      %463 = vdwg.mxu0
      %vm464 = vcmp.gt.f32.partialorder %v459, 0.0
      %vm465 = vcmp.gt.f32.partialorder %v462, 0.0
      %v466 = vmin.f32 %v459, 0.0
      %v467 = vmin.f32 %v462, 0.0
      %v468 = vmul.f32 %v466, 1.442695
      %v469 = vpow.pop %v468
      %v470 = vmul.f32 %v467, 1.442695
      %v471 = vpow.pop %v470
      %v472 = vsub.f32 %v469, 1.0
      %v473 = vsub.f32 %v471, 1.0
      %v474 = vsel %vm464, %v459, %v472
      %v475 = vsel %vm465, %v462, %v473
      %v476 = vld [vmem:[%s3] sm:$0xff]
      %v477 = vld [vmem:[%s3 + $0x8] sm:$0xff]
      %v478 = vld [vmem:[%s3 + $0x10] sm:$0xff]
      %v479 = vld [vmem:[%s3 + $0x18] sm:$0xff]
      %v480 = vld [vmem:[%s3 + $0x20] sm:$0xff]
      %v481 = vld [vmem:[%s3 + $0x28] sm:$0xff]
      %v482 = vld [vmem:[%s3 + $0x30] sm:$0xff]
      %v483 = vld [vmem:[%s3 + $0x38] sm:$0xff]
      %v484 = vld [vmem:[%s3 + $0x40] sm:$0xff]
      %v485 = vld [vmem:[%s3 + $0x48] sm:$0xff]
      %v486 = vld [vmem:[%s3 + $0x50] sm:$0xff]
      %v487 = vld [vmem:[%s3 + $0x58] sm:$0xff]
      %v488 = vld [vmem:[%s3 + $0x60] sm:$0xff]
      %v489 = vld [vmem:[%s3 + $0x68] sm:$0xff]
      %v490 = vld [vmem:[%s3 + $0x70] sm:$0xff]
      %v491 = vld [vmem:[%s3 + $0x78] sm:$0xff]
      %492 = vmatpush.msra.mxu0 %v491
      %493 = vmatpush.msra.mxu0 %v490
      %494 = vmatpush.msra.mxu0 %v489
      %495 = vmatpush.msra.mxu0 %v488
      %496 = vmatpush.msra.mxu0 %v487
      %497 = vmatpush.msra.mxu0 %v486
      %498 = vmatpush.msra.mxu0 %v485
      %499 = vmatpush.msra.mxu0 %v484
      %500 = vmatpush.msra.mxu0 %v483
      %501 = vmatpush.msra.mxu0 %v482
      %502 = vmatpush.msra.mxu0 %v481
      %503 = vmatpush.msra.mxu0 %v480
      %504 = vmatpush.msra.mxu0 %v479
      %505 = vmatpush.msra.mxu0 %v478
      %506 = vmatpush.msra.mxu0 %v477
      %507 = vmatpush.msra.mxu0 %v476
      %508 = vmatmul.f32.gmra.mxu0 %v474
      %v509 = vpop.f32.mrf.mxu0
      %v510 = vadd.f32 0.0, %v509
      %511 = vmatmul.f32.gmra.mxu0 %v475
      %v512 = vpop.f32.mrf.mxu0
      %v513 = vadd.f32 0.0, %v512
      %514 = vdwg.mxu0
      %v515 = vld [vmem:[%s4] sm:$0xff]
      %v516 = vld [vmem:[%s4 + $0x8] sm:$0xff]
      %v517 = vld [vmem:[%s4 + $0x10] sm:$0xff]
      %v518 = vld [vmem:[%s4 + $0x18] sm:$0xff]
      %v519 = vld [vmem:[%s4 + $0x20] sm:$0xff]
      %v520 = vld [vmem:[%s4 + $0x28] sm:$0xff]
      %v521 = vld [vmem:[%s4 + $0x30] sm:$0xff]
      %v522 = vld [vmem:[%s4 + $0x38] sm:$0xff]
      %v523 = vld [vmem:[%s4 + $0x40] sm:$0xff]
      %v524 = vld [vmem:[%s4 + $0x48] sm:$0xff]
      %v525 = vld [vmem:[%s4 + $0x50] sm:$0xff]
      %v526 = vld [vmem:[%s4 + $0x58] sm:$0xff]
      %v527 = vld [vmem:[%s4 + $0x60] sm:$0xff]
      %v528 = vld [vmem:[%s4 + $0x68] sm:$0xff]
      %v529 = vld [vmem:[%s4 + $0x70] sm:$0xff]
      %v530 = vld [vmem:[%s4 + $0x78] sm:$0xff]
      %531 = vmatpush.msra.mxu0 %v530
      %532 = vmatpush.msra.mxu0 %v529
      %533 = vmatpush.msra.mxu0 %v528
      %534 = vmatpush.msra.mxu0 %v527
      %535 = vmatpush.msra.mxu0 %v526
      %536 = vmatpush.msra.mxu0 %v525
      %537 = vmatpush.msra.mxu0 %v524
      %538 = vmatpush.msra.mxu0 %v523
      %539 = vmatpush.msra.mxu0 %v522
      %540 = vmatpush.msra.mxu0 %v521
      %541 = vmatpush.msra.mxu0 %v520
      %542 = vmatpush.msra.mxu0 %v519
      %543 = vmatpush.msra.mxu0 %v518
      %544 = vmatpush.msra.mxu0 %v517
      %545 = vmatpush.msra.mxu0 %v516
      %546 = vmatpush.msra.mxu0 %v515
      %547 = vmatmul.f32.gmra.mxu0 %v474
      %v548 = vpop.f32.mrf.mxu0
      %v549 = vadd.f32 0.0, %v548
      %550 = vmatmul.f32.gmra.mxu0 %v475
      %v551 = vpop.f32.mrf.mxu0
      %v552 = vadd.f32 0.0, %v551
      %553 = vdwg.mxu0
      %v554 = vld [vmem:[%s5] sm:$0xff]
      %v555 = vld [vmem:[%s5 + $0x8] sm:$0xff]
      %v556 = vld [vmem:[%s5 + $0x10] sm:$0xff]
      %v557 = vld [vmem:[%s5 + $0x18] sm:$0xff]
      %v558 = vld [vmem:[%s5 + $0x20] sm:$0xff]
      %v559 = vld [vmem:[%s5 + $0x28] sm:$0xff]
      %v560 = vld [vmem:[%s5 + $0x30] sm:$0xff]
      %v561 = vld [vmem:[%s5 + $0x38] sm:$0xff]
      %v562 = vld [vmem:[%s5 + $0x40] sm:$0xff]
      %v563 = vld [vmem:[%s5 + $0x48] sm:$0xff]
      %v564 = vld [vmem:[%s5 + $0x50] sm:$0xff]
      %v565 = vld [vmem:[%s5 + $0x58] sm:$0xff]
      %v566 = vld [vmem:[%s5 + $0x60] sm:$0xff]
      %v567 = vld [vmem:[%s5 + $0x68] sm:$0xff]
      %v568 = vld [vmem:[%s5 + $0x70] sm:$0xff]
      %v569 = vld [vmem:[%s5 + $0x78] sm:$0xff]
      %570 = vmatpush.msra.mxu0 %v569
      %571 = vmatpush.msra.mxu0 %v568
      %572 = vmatpush.msra.mxu0 %v567
      %573 = vmatpush.msra.mxu0 %v566
      %574 = vmatpush.msra.mxu0 %v565
      %575 = vmatpush.msra.mxu0 %v564
      %576 = vmatpush.msra.mxu0 %v563
      %577 = vmatpush.msra.mxu0 %v562
      %578 = vmatpush.msra.mxu0 %v561
      %579 = vmatpush.msra.mxu0 %v560
      %580 = vmatpush.msra.mxu0 %v559
      %581 = vmatpush.msra.mxu0 %v558
      %582 = vmatpush.msra.mxu0 %v557
      %583 = vmatpush.msra.mxu0 %v556
      %584 = vmatpush.msra.mxu0 %v555
      %585 = vmatpush.msra.mxu0 %v554
      %586 = vmatmul.f32.gmra.mxu0 %v474
      %v587 = vpop.f32.mrf.mxu0
      %v588 = vadd.f32 0.0, %v587
      %589 = vmatmul.f32.gmra.mxu0 %v475
      %v590 = vpop.f32.mrf.mxu0
      %v591 = vadd.f32 0.0, %v590
      %592 = vdwg.mxu0
      %v593 = vld [vmem:[%s6] sm:$0xff]
      %v594 = vld [vmem:[%s6 + $0x8] sm:$0xff]
      %596 = vset.pattern.permute.xlu0 0
      %597 = vperm.xlu0 %596, %v593
      %v598 = vpop.permute.xlu0 %597
      %601 = vset.pattern.permute.xlu0 0
      %602 = vperm.xlu0 %601, %v594
      %v603 = vpop.permute.xlu0 %602
      %v605 = vmul.f32 %v598, %v510
      %v606 = vmul.f32 %v603, %v513
      %607 = vset.pattern.permute.xlu0 1
      %608 = vperm.xlu0 %607, %v593
      %v609 = vpop.permute.xlu0 %608
      %611 = vset.pattern.permute.xlu0 1
      %612 = vperm.xlu0 %611, %v594
      %v613 = vpop.permute.xlu0 %612
      %v615 = vmul.f32 %v609, %v549
      %v616 = vmul.f32 %v613, %v552
      %v617 = vadd.f32 %v605, %v615
      %v618 = vadd.f32 %v606, %v616
      %619 = vset.pattern.permute.xlu0 2
      %620 = vperm.xlu0 %619, %v593
      %v621 = vpop.permute.xlu0 %620
      %623 = vset.pattern.permute.xlu0 2
      %624 = vperm.xlu0 %623, %v594
      %v625 = vpop.permute.xlu0 %624
      %v627 = vmul.f32 %v621, %v588
      %v628 = vmul.f32 %v625, %v591
      %v629 = vadd.f32 %v617, %v627
      %v630 = vadd.f32 %v618, %v628
      %v631 = vld [vmem:[%s7] sm:$0xff]
      %v632 = vld [vmem:[%s7 + $0x8] sm:$0xff]
      %634 = vset.pattern.permute.xlu0 0
      %635 = vperm.xlu0 %634, %v631
      %v636 = vpop.permute.xlu0 %635
      %639 = vset.pattern.permute.xlu0 0
      %640 = vperm.xlu0 %639, %v632
      %v641 = vpop.permute.xlu0 %640
      %v643 = vadd.f32 %v629, %v636
      %v644 = vadd.f32 %v630, %v641
      %v645 = vld [vmem:[%s8] sm:$0xff]
      %v646 = vld [vmem:[%s9] sm:$0xff]
      %648 = vset.pattern.permute.xlu0 0
      %649 = vperm.xlu0 %648, %v646
      %v650 = vpop.permute.xlu0 %649
      %vm652 = vcmask 130048
      %v654 = vsel %vm652, %v645, 0
      %656 = vmatpush.msra.mxu0 0.0
      %657 = vmatpush.msra.mxu0 0.0
      %658 = vmatpush.msra.mxu0 0.0
      %659 = vmatpush.msra.mxu0 0.0
      %660 = vmatpush.msra.mxu0 0.0
      %661 = vmatpush.msra.mxu0 0.0
      %662 = vmatpush.msra.mxu0 0.0
      %663 = vmatpush.msra.mxu0 0.0
      %664 = vmatpush.msra.mxu0 0.0
      %665 = vmatpush.msra.mxu0 0.0
      %666 = vmatpush.msra.mxu0 0.0
      %667 = vmatpush.msra.mxu0 0.0
      %668 = vmatpush.msra.mxu0 0.0
      %669 = vmatpush.msra.mxu0 0.0
      %670 = vmatpush.msra.mxu0 %v644
      %671 = vmatpush.msra.mxu0 %v643
      %672 = vmatmul.f32.gmra.mxu0 %v654
      %v673 = vpop.f32.mrf.mxu0
      %v674 = vadd.f32 %v650, %v673
      %675 = vdwg.mxu0
      %vm676 = vcmp.gt.f32.partialorder %v674, 0.0
      %v677 = vmin.f32 %v674, 0.0
      %v678 = vmul.f32 %v677, 1.442695
      %v679 = vpow.pop %v678
      %v680 = vsub.f32 %v679, 1.0
      %v681 = vsel %vm676, %v674, %v680
      %v682 = vld [vmem:[%s10] sm:$0xff]
      %v683 = vmul.f32 %v681, %v682
      %vm684 = vcmask 162816
      %v685 = vsel %vm684, %v683, 0.0
      %v686 = vrot.slane %v685, 4
      %v687 = vadd.f32 %v685, %v686
      %v688 = vrot.slane %v687, 2
      %v689 = vadd.f32 %v687, %v688
      %v690 = vrot.slane %v689, 1
      %v691 = vadd.f32 %v689, %v690
      %v692 = vsel %vm684, %v691, 0.0
      %693 = vadd.xlane.f32.xlu0 %v692
      %v694 = vpop.xlane.xlu0 %693
      %v695 = vld [vmem:[#allocation2] sm:$0x1]
      %v696 = vadd.f32 %v694, %v695
      %vm697 = vcmask 0
      %698 = vst.msk [vmem:[%s408] sm:$0x1] %vm697, %v696
      %p699 = scmp.lt.s32.totalorder %s25, 1
      %s700 = scalar_select %p699, %s25, 1
      %s701 = scalar_lea.vmem %s12, %s700
      // Predicated region
      $region69: #{_lambda_.1} parent=67 // pred_check
        %p702 = pneg %p300
      $region70: #{_lambda_.1} parent=67 // pred_check_branch
        %704 = sbr.rel (%p702) target = $region72
      $region71: #{_lambda_.1} parent=67 // pred_region
        _
      $region72: #{_lambda_.1} parent=67 // pred_fallthru
        _
    $region68: #{_lambda_.1} parent=5 // pred_fallthru
      _
    %p705 = scmp.le.s32.totalorder 2, %s20
    // Predicated region
    $region73: #{_lambda_.1} parent=5 // pred_check
      %p706 = pneg %p705
    $region74: #{_lambda_.1} parent=5 // pred_check_branch
      %708 = sbr.rel (%p706) target = $region76
    $region75: #{_lambda_.1} parent=5 // pred_region
      %s709 = ssub.s32 %s20, 2
      // Predicated region
      $region77: #{_lambda_.1} parent=75 // pred_check
        %p710 = pneg %p306
      $region78: #{_lambda_.1} parent=75 // pred_check_branch
        %712 = sbr.rel (%p710) target = $region80
      $region79: #{_lambda_.1} parent=75 // pred_region
        %p713 = scmp.lt.s32.totalorder %s26, 1
        %s714 = scalar_select %p713, %s26, 1
        %s715 = scalar_lea.vmem %s12, %s714
      $region80: #{_lambda_.1} parent=75 // pred_fallthru
        _
    $region76: #{_lambda_.1} parent=5 // pred_fallthru
      _
  $region6: #{_lambda_.1} parent=0 // loop_footer
    %s24 = sadd.s32 1, %s20
  $region7: #{_lambda_.1} parent=0 // loop_footer_branch
    %19 = sbr.rel target = $region3
  $region8: #{_lambda_.1} parent=0 // loop_exit
    _

</llo_original>
